<compile_context>
chip_gen: v6e
topology: v6e:2x2x1
jax: 0.10.0
libtpu: 0.0.40
codegen_flags: <defaults>
</compile_context>

<pallas_src>
import jax
import jax.numpy as jnp
from jax.experimental import pallas as pl
from jax.experimental.pallas import tpu as pltpu


# --------------------------------------------------------------------------- #
# Kernel
# --------------------------------------------------------------------------- #
def _head_kernel(x_ref, w1_ref, b1_ref, w2_ref, b2_ref, out_ref, acc_ref):
    # Grid: (i over batch tiles [parallel], k over hidden/K tiles [arbitrary]).
    # x_ref:  [tm, tk]      w1_ref: [tk, Hk]    b1_ref: [1, Hk]
    # w2_ref: [Hk, Lp]      b2_ref: [1, Lp]     out_ref: [tm, Lp]
    # acc_ref: [tm, Hk] f32 scratch (persists across the K axis).
    k = pl.program_id(1)

    @pl.when(k == 0)
    def _init():
        # Fold the dense bias into the accumulator init (saves a full-tile add).
        acc_ref[...] = jnp.zeros_like(acc_ref) + b1_ref[...].astype(jnp.float32)

    x = x_ref[...].astype(w1_ref.dtype)
    acc_ref[...] += jnp.dot(x, w1_ref[...], preferred_element_type=jnp.float32)

    @pl.when(k == pl.num_programs(1) - 1)
    def _finalize():
        h = jnp.tanh(acc_ref[...])                       # EUP
        y = jnp.dot(h.astype(w2_ref.dtype), w2_ref[...],
                    preferred_element_type=jnp.float32)
        y = y + b2_ref[...].astype(jnp.float32)
        out_ref[...] = y.astype(out_ref.dtype)           # lane-dense (Lp>=128) store


# --------------------------------------------------------------------------- #
# Planning helpers
# --------------------------------------------------------------------------- #
def _round_up(x, m):
    return (x + m - 1) // m * m


def _vmem_capacity_bytes():
    try:
        return int(pltpu.get_tpu_info().vmem_capacity_bytes)
    except Exception:
        return 64 * 1024 * 1024      # v7x per-core VMEM; safe lower bound everywhere


def _align_tm(tm):
    tm = _round_up(max(tm, 1), 8)
    # Prefer MXU-friendly 256/128 row tiles when the extra padding is small.
    for m in (256, 128):
        r = _round_up(tm, m)
        if r <= tm + max(tm // 4, 8):
            return r
    return tm


def _plan(B, H, L, w_itemsize, x_itemsize, out_itemsize):
    Hk = _round_up(H, 128)
    Lp = _round_up(L, 128)
    capacity = _vmem_capacity_bytes()
    budget = int(capacity * 0.70)                      # headroom for compiler scratch
    limit = max(32 << 20, min(int(capacity * 0.85), capacity - (4 << 20)))

    const_bytes = (Hk * 4) + (Hk * Lp * w_itemsize) + (Lp * 4)   # b1, W2, b2 (1 buffer each)

    def usage(tm, tk, resident):
        u = const_bytes
        u += 2 * tm * tk * x_itemsize                                    # x (double-buffered)
        u += (Hk * Hk * w_itemsize) if resident else (2 * tk * Hk * w_itemsize)
        u += 2 * tm * Lp * out_itemsize                                  # out (double-buffered)
        u += tm * Hk * 4                                                 # f32 accumulator
        return u

    # Option A: W1 fully resident in VMEM -> streamed from HBM exactly once,
    # regardless of the number of batch tiles.  Prefer 2 batch tiles so v7x's
    # two TensorCores both get work (free on v5e/v6e since W1 isn't re-streamed).
    if Hk * Hk * w_itemsize <= budget:
        for ntiles in ((2, 1) if B > 8 else (1,)):
            tm = _align_tm(-(-B // ntiles))
            if usage(tm, Hk, True) <= budget:
                return dict(tm=tm, tk=Hk, ntiles=ntiles, resident=True,
                            Hk=Hk, Lp=Lp, vmem_limit=limit)

    # Option B: K-tiled W1.  Every extra batch tile re-streams W1 -> minimize the
    # batch-tile count first, then take the largest K tile that fits.
    tk_cands = [t for t in (2048, 1024, 512, 256, 128) if Hk % t == 0]
    for ntiles in range(1, 4096):
        tm = _align_tm(-(-B // ntiles))
        for tk in tk_cands:
            if usage(tm, tk, False) <= budget:
                return dict(tm=tm, tk=tk, ntiles=ntiles, resident=False,
                            Hk=Hk, Lp=Lp, vmem_limit=limit)
    raise ValueError("could not find a VMEM-feasible tiling")


def _const_spec(shape):
    """BlockSpec with a constant block index -> loaded once, single-buffered."""
    index_map = lambda i, k: (0,) * len(shape)
    try:
        return pl.BlockSpec(shape, index_map, pipeline_mode=pl.Buffered(1))
    except Exception:                                   # older API without pipeline_mode
        return pl.BlockSpec(shape, index_map)


# --------------------------------------------------------------------------- #
# Wrapper
# --------------------------------------------------------------------------- #
def classification_head(features, w_dense, b_dense, w_out, b_out,
                        compute_dtype=jnp.bfloat16):
    """features: [B, S, H].  Weights stored (in_features, out_features).
    Returns logits [B, num_labels].

    compute_dtype is the MXU input dtype for weights/activations (accumulation
    is always f32).  bf16 is the production default (halves W1 HBM traffic on
    this memory-bound kernel).  Pass jnp.float32 / None for exact-f32 logits.
    """
    B, S, H = features.shape
    L = w_out.shape[1]
    assert w_dense.shape == (H, H) and w_out.shape[0] == H
    assert b_dense.shape == (H,) and b_out.shape == (L,)

    if compute_dtype is not None:
        w_dense = w_dense.astype(compute_dtype)
        w_out = w_out.astype(compute_dtype)

    out_dtype = features.dtype
    plan = _plan(B, H, L,
                 jnp.dtype(w_dense.dtype).itemsize,
                 jnp.dtype(features.dtype).itemsize,
                 jnp.dtype(out_dtype).itemsize)
    Hk, Lp = plan["Hk"], plan["Lp"]
    tm, tk, ntiles = plan["tm"], plan["tk"], plan["ntiles"]
    B_pad = ntiles * tm

    # ---- [CLS] slice -------------------------------------------------------- #
    if B_pad == B and H == Hk:
        # Zero-copy fused slice: row-major reshape [B,S,H] -> [B,S*H] is metadata
        # only; token 0's hidden vector is exactly columns [0,H) of every row,
        # which is all the x BlockSpec ever DMAs (no stale-column reads).
        xsrc = features.reshape(B, S * H)
    else:
        x = features[:, 0, :]
        xsrc = jnp.pad(x, ((0, B_pad - B), (0, Hk - H)))

    # ---- zero-pad parameters to tile-friendly shapes ------------------------- #
    w1p = jnp.pad(w_dense, ((0, Hk - H), (0, Hk - H))) if Hk != H else w_dense
    b1p = (jnp.pad(b_dense, (0, Hk - H)) if Hk != H else b_dense).reshape(1, Hk)
    w2p = (jnp.pad(w_out, ((0, Hk - H), (0, Lp - L)))
           if (Hk != H or Lp != L) else w_out)
    b2p = (jnp.pad(b_out, (0, Lp - L)) if Lp != L else b_out).reshape(1, Lp)

    grid = (ntiles, Hk // tk)
    w_itm = jnp.dtype(w1p.dtype).itemsize
    w1_streams = 1 if plan["resident"] else ntiles      # actual HBM traffic for W1

    cost = pl.CostEstimate(
        flops=int(2 * B_pad * Hk * Hk + 2 * B_pad * Hk * Lp),
        transcendentals=int(B_pad * Hk),
        bytes_accessed=int(B_pad * Hk * xsrc.dtype.itemsize
                           + w1_streams * Hk * Hk * w_itm
                           + Hk * b1p.dtype.itemsize
                           + Hk * Lp * w_itm
                           + Lp * b2p.dtype.itemsize
                           + B_pad * Lp * jnp.dtype(out_dtype).itemsize),
    )

    if plan["resident"]:
        w1_spec = _const_spec((tk, Hk))                       # loaded once, 1 buffer
    else:
        w1_spec = pl.BlockSpec((tk, Hk), lambda i, k: (k, 0))  # pipelined K slabs

    out_padded = pl.pallas_call(
        _head_kernel,
        out_shape=jax.ShapeDtypeStruct((B_pad, Lp), out_dtype),
        grid=grid,
        in_specs=[
            pl.BlockSpec((tm, tk), lambda i, k: (i, k)),      # x (CLS rows)
            w1_spec,                                          # W1
            _const_spec((1, Hk)),                             # b1
            _const_spec((Hk, Lp)),                            # W2
            _const_spec((1, Lp)),                             # b2
        ],
        out_specs=pl.BlockSpec((tm, Lp), lambda i, k: (i, 0)),
        scratch_shapes=[pltpu.VMEM((tm, Hk), jnp.float32)],
        compiler_params=pltpu.CompilerParams(
            dimension_semantics=("parallel", "arbitrary"),
            vmem_limit_bytes=int(plan["vmem_limit"]),
        ),
        cost_estimate=cost,
    )(xsrc, w1p, b1p, w2p, b2p)

    return out_padded[:B, :L]


# --------------------------------------------------------------------------- #
# Reference & demo
# --------------------------------------------------------------------------- #
def reference(features, w_dense, b_dense, w_out, b_out):
    x = features[:, 0, :]
    h = jnp.tanh(x @ w_dense + b_dense)
    return h @ w_out + b_out


if __name__ == "__main__":
    # Small, module-consistent shapes: batch=2, seq=8, hidden=32, num_labels=4.
    B, S, H, L = 2, 8, 32, 4

    key = jax.random.PRNGKey(0)
    k_feat, k_w1, k_b1, k_w2, k_b2 = jax.random.split(key, 5)

    features = jax.random.normal(k_feat, (B, S, H), dtype=jnp.float32)
    w_dense = jax.random.normal(k_w1, (H, H), dtype=jnp.float32) * 0.05
    b_dense = jax.random.normal(k_b1, (H,), dtype=jnp.float32) * 0.05
    w_out = jax.random.normal(k_w2, (H, L), dtype=jnp.float32) * 0.05
    b_out = jax.random.normal(k_b2, (L,), dtype=jnp.float32) * 0.05

    ref = reference(features, w_dense, b_dense, w_out, b_out)

    # Exact-f32 path (tight tolerance).
    out_f32 = jax.block_until_ready(
        classification_head(features, w_dense, b_dense, w_out, b_out,
                            compute_dtype=jnp.float32))
    assert out_f32.shape == (B, L), out_f32.shape
    assert jnp.allclose(out_f32, ref, atol=1e-5, rtol=1e-5), (out_f32, ref)

    # Production path: bf16 weights (f32 accumulation) — looser tolerance.
    out_bf16 = jax.block_until_ready(
        classification_head(features, w_dense, b_dense, w_out, b_out))
    assert out_bf16.shape == (B, L), out_bf16.shape
    assert jnp.allclose(out_bf16, ref, atol=3e-2, rtol=3e-2), (out_bf16, ref)

    print("KERNEL_OK")
</pallas_src>

<mosaic_0001>
module attributes {stable_mosaic.version = 11 : i64} {
  func.func @_head_kernel(%arg0: i32, %arg1: i32, %arg2: memref<8x128xf32, #tpu.memory_space<vmem>>, %arg3: memref<128x128xf32, #tpu.memory_space<vmem>>, %arg4: memref<1x128xf32, #tpu.memory_space<vmem>>, %arg5: memref<128x128xf32, #tpu.memory_space<vmem>>, %arg6: memref<1x128xf32, #tpu.memory_space<vmem>>, %arg7: memref<8x128xf32, #tpu.memory_space<vmem>>, %arg8: memref<8x128xf32, #tpu.memory_space<vmem>>) attributes {dimension_semantics = [#tpu.dimension_semantics<parallel>, #tpu.dimension_semantics<arbitrary>], iteration_bounds = array<i64: 1, 1>, scalar_prefetch = 0 : i64, scratch_operands = 1 : i64, tpu.core_type = #tpu.core_type<tc>, window_params = [{transform_indices = @transform_0, window_bounds = array<i64: 8, 128>}, {pipeline_mode = #tpu.pipeline_mode<synchronous>, transform_indices = @transform_1, window_bounds = array<i64: 128, 128>}, {pipeline_mode = #tpu.pipeline_mode<synchronous>, transform_indices = @transform_2, window_bounds = array<i64: 1, 128>}, {pipeline_mode = #tpu.pipeline_mode<synchronous>, transform_indices = @transform_3, window_bounds = array<i64: 128, 128>}, {pipeline_mode = #tpu.pipeline_mode<synchronous>, transform_indices = @transform_4, window_bounds = array<i64: 1, 128>}, {transform_indices = @transform_5, window_bounds = array<i64: 8, 128>}]} {
    %c0_i32 = arith.constant 0 : i32
    %0 = arith.cmpi eq, %arg1, %c0_i32 : i32
    %1 = arith.extui %0 : i1 to i32
    %c0_i32_0 = arith.constant 0 : i32
    %2 = arith.cmpi ne, %1, %c0_i32_0 : i32
    scf.if %2 {
      %cst_10 = arith.constant 0.000000e+00 : f32
      %12 = vector.broadcast %cst_10 : f32 to vector<8x128xf32>
      %c0_11 = arith.constant 0 : index
      %c0_12 = arith.constant 0 : index
      %13 = vector.load %arg4[%c0_11, %c0_12] : memref<1x128xf32, #tpu.memory_space<vmem>>, vector<1x128xf32>
      %14 = vector.broadcast %13 : vector<1x128xf32> to vector<8x128xf32>
      %15 = arith.addf %12, %14 : vector<8x128xf32>
      %c0_13 = arith.constant 0 : index
      %c0_14 = arith.constant 0 : index
      %16 = vector.load %arg8[%c0_13, %c0_14] : memref<8x128xf32, #tpu.memory_space<vmem>>, vector<8x128xf32>
      tpu.vector_store %arg8[%c0_13, %c0_14], %15 {strides = array<i32>} : memref<8x128xf32, #tpu.memory_space<vmem>>, vector<8x128xf32>,
    } else {
    }
    %c0 = arith.constant 0 : index
    %c0_1 = arith.constant 0 : index
    %3 = vector.load %arg2[%c0, %c0_1] : memref<8x128xf32, #tpu.memory_space<vmem>>, vector<8x128xf32>
    %c0_2 = arith.constant 0 : index
    %c0_3 = arith.constant 0 : index
    %4 = vector.load %arg8[%c0_2, %c0_3] : memref<8x128xf32, #tpu.memory_space<vmem>>, vector<8x128xf32>
    %c0_4 = arith.constant 0 : index
    %c0_5 = arith.constant 0 : index
    %5 = vector.load %arg3[%c0_4, %c0_5] : memref<128x128xf32, #tpu.memory_space<vmem>>, vector<128x128xf32>
    %cst = arith.constant dense<0.000000e+00> : vector<8x128xf32>
    %6 = tpu.matmul %3, %5, %cst {dimension_numbers = #tpu.dot_dimension_numbers<[1], [0], [0], [1], [0, 0, 1, 1], [], []>} : vector<8x128xf32>, vector<128x128xf32>, vector<8x128xf32> -> vector<8x128xf32>
    %7 = arith.addf %4, %6 : vector<8x128xf32>
    %c0_6 = arith.constant 0 : index
    %c0_7 = arith.constant 0 : index
    %8 = vector.load %arg8[%c0_6, %c0_7] : memref<8x128xf32, #tpu.memory_space<vmem>>, vector<8x128xf32>
    tpu.vector_store %arg8[%c0_6, %c0_7], %7 {strides = array<i32>} : memref<8x128xf32, #tpu.memory_space<vmem>>, vector<8x128xf32>,
    %c0_i32_8 = arith.constant 0 : i32
    %9 = arith.cmpi eq, %arg1, %c0_i32_8 : i32
    %10 = arith.extui %9 : i1 to i32
    %c0_i32_9 = arith.constant 0 : i32
    %11 = arith.cmpi ne, %10, %c0_i32_9 : i32
    scf.if %11 {
      %c0_10 = arith.constant 0 : index
      %c0_11 = arith.constant 0 : index
      %12 = vector.load %arg8[%c0_10, %c0_11] : memref<8x128xf32, #tpu.memory_space<vmem>>, vector<8x128xf32>
      %13 = math.tanh %12 : vector<8x128xf32>
      %c0_12 = arith.constant 0 : index
      %c0_13 = arith.constant 0 : index
      %14 = vector.load %arg5[%c0_12, %c0_13] : memref<128x128xf32, #tpu.memory_space<vmem>>, vector<128x128xf32>
      %cst_14 = arith.constant dense<0.000000e+00> : vector<8x128xf32>
      %15 = tpu.matmul %13, %14, %cst_14 {dimension_numbers = #tpu.dot_dimension_numbers<[1], [0], [0], [1], [0, 0, 1, 1], [], []>} : vector<8x128xf32>, vector<128x128xf32>, vector<8x128xf32> -> vector<8x128xf32>
      %c0_15 = arith.constant 0 : index
      %c0_16 = arith.constant 0 : index
      %16 = vector.load %arg6[%c0_15, %c0_16] : memref<1x128xf32, #tpu.memory_space<vmem>>, vector<1x128xf32>
      %17 = vector.broadcast %16 : vector<1x128xf32> to vector<8x128xf32>
      %18 = arith.addf %15, %17 : vector<8x128xf32>
      %c0_17 = arith.constant 0 : index
      %c0_18 = arith.constant 0 : index
      %19 = vector.load %arg7[%c0_17, %c0_18] : memref<8x128xf32, #tpu.memory_space<vmem>>, vector<8x128xf32>
      tpu.vector_store %arg7[%c0_17, %c0_18], %18 {strides = array<i32>} : memref<8x128xf32, #tpu.memory_space<vmem>>, vector<8x128xf32>,
    } else {
    }
    return
  }
  func.func @transform_0(%arg0: i32, %arg1: i32) -> (i32, i32) {
    %c0_i32 = arith.constant 0 : i32
    return %arg0, %arg1 : i32, i32
  }
  func.func @transform_1(%arg0: i32, %arg1: i32) -> (i32, i32) {
    %c0_i32 = arith.constant 0 : i32
    %c0_i32_0 = arith.constant 0 : i32
    %c0_i32_1 = arith.constant 0 : i32
    return %c0_i32, %c0_i32_0 : i32, i32
  }
  func.func @transform_2(%arg0: i32, %arg1: i32) -> (i32, i32) {
    %c0_i32 = arith.constant 0 : i32
    %c0_i32_0 = arith.constant 0 : i32
    %c0_i32_1 = arith.constant 0 : i32
    return %c0_i32, %c0_i32_0 : i32, i32
  }
  func.func @transform_3(%arg0: i32, %arg1: i32) -> (i32, i32) {
    %c0_i32 = arith.constant 0 : i32
    %c0_i32_0 = arith.constant 0 : i32
    %c0_i32_1 = arith.constant 0 : i32
    return %c0_i32, %c0_i32_0 : i32, i32
  }
  func.func @transform_4(%arg0: i32, %arg1: i32) -> (i32, i32) {
    %c0_i32 = arith.constant 0 : i32
    %c0_i32_0 = arith.constant 0 : i32
    %c0_i32_1 = arith.constant 0 : i32
    return %c0_i32, %c0_i32_0 : i32, i32
  }
  func.func @transform_5(%arg0: i32, %arg1: i32) -> (i32, i32) {
    %c0_i32 = arith.constant 0 : i32
    %c0_i32_0 = arith.constant 0 : i32
    return %arg0, %c0_i32 : i32, i32
  }
}

</mosaic_0001>

<llo_original>
// kernel: tpu_custom_call.1
$region0: #{tpu_custom_call.1}
  #allocation0 [shape = 'u32[]', space=smem, size = 0x4, offset = 0x4, fixed_abs, tag = 'smem constant byte address 0x4 - core index']
  #allocation1 [shape = 'u32[144,128]{1,0:T(1,128)}', space=vmem, size = 0x12000, scoped, tag = 'internal scratch']
  #allocation2 [shape = 'f32[8,128]{1,0:T(8,128)}', space=vmem, size = 0x1000, scoped, tag = 'scratch operand']
  %s0 = inlined_call_operand.hbm [shape: f32[8,128], index: 0, kind: input, shape index: {}]
  %s1 = inlined_call_operand.hbm [shape: f32[128,128], index: 1, kind: input, shape index: {}]
  %s2 = inlined_call_operand.vmem [shape: f32[1,128], index: 2, kind: input, shape index: {}]
  %s3 = inlined_call_operand.hbm [shape: f32[128,128], index: 3, kind: input, shape index: {}]
  %s4 = inlined_call_operand.vmem [shape: f32[1,128], index: 4, kind: input, shape index: {}]
  %s5 = inlined_call_operand.hbm [shape: f32[8,128], index: 5, kind: output, shape index: {}]
  %s6 = sld [smem:[#allocation0]]
  $region50: #{tpu_custom_call.1} parent=0
    _
  %s8 = ssub.s32 1, %s6
  %s9 = scalar_select 0, %s8, %s6
  $region1: #{tpu_custom_call.1} parent=0
    #allocation3 [shape = 'u8[4096]{0}', space=vmem, size = 0x1000, scoped, tag = 'input window, operand 0, single buffered']
    #allocation4 [shape = 's32[1]{0}', space=sflag, size = 0x4, scoped, tag = 'scoped memory for tpu_custom_call.1']
    #allocation5 [shape = 's32[1]{0}', space=sflag, size = 0x4, scoped, tag = 'scoped memory for tpu_custom_call.1']
    #allocation6 [shape = 'u8[65536]{0}', space=vmem, size = 0x10000, scoped, tag = 'input window, operand 1, single buffered']
    #allocation7 [shape = 's32[1]{0}', space=sflag, size = 0x4, scoped, tag = 'scoped memory for tpu_custom_call.1']
    #allocation8 [shape = 'u8[65536]{0}', space=vmem, size = 0x10000, scoped, tag = 'input window, operand 3, single buffered']
    #allocation9 [shape = 'u8[4096]{0}', space=vmem, size = 0x1000, scoped, tag = 'output window, operand 0, single buffered']
    %10 = vsyncpa [#allocation4], 0
    %11 = vsyncpa [#allocation7], 0
    %12 = vsyncpa [#allocation5], 0
    // Predicated region
    $region2: #{tpu_custom_call.1} parent=1 // pred_check
      _
    $region3: #{tpu_custom_call.1} parent=1 // pred_check_branch
      %14 = sbr.rel (0) target = $region5
    $region4: #{tpu_custom_call.1} parent=1 // pred_region
      %s16 = ssub.s32 128, 128
      %17 = vsyncadd [#allocation4], %s16
      %s19 = sshll.u32 [#allocation3], 4
      %s20 = int_to_ptr.vmem [resolvable:$true] %s19
      %22 = dma.hbm_to_vmem [thread:$0]  %s0, 128, %s20, [#allocation4]
    $region5: #{tpu_custom_call.1} parent=1 // pred_fallthru
      _
    // Predicated region
    $region6: #{tpu_custom_call.1} parent=1 // pred_check
      _
    $region7: #{tpu_custom_call.1} parent=1 // pred_check_branch
      %24 = sbr.rel (0) target = $region9
    $region8: #{tpu_custom_call.1} parent=1 // pred_region
      %s26 = ssub.s32 2048, 2048
      %27 = vsyncadd [#allocation7], %s26
      %s28 = sshll.u32 [#allocation6], 4
      %s29 = int_to_ptr.vmem [resolvable:$true] %s28
      %34 = dma.hbm_to_vmem [thread:$0]  %s1, 2048, %s29, [#allocation7], 128, 128, 8
    $region9: #{tpu_custom_call.1} parent=1 // pred_fallthru
      _
    // Predicated region
    $region10: #{tpu_custom_call.1} parent=1 // pred_check
      _
    $region11: #{tpu_custom_call.1} parent=1 // pred_check_branch
      %36 = sbr.rel (0) target = $region13
    $region12: #{tpu_custom_call.1} parent=1 // pred_region
      _
    $region13: #{tpu_custom_call.1} parent=1 // pred_fallthru
      _
    // Predicated region
    $region14: #{tpu_custom_call.1} parent=1 // pred_check
      _
    $region15: #{tpu_custom_call.1} parent=1 // pred_check_branch
      %38 = sbr.rel (0) target = $region17
    $region16: #{tpu_custom_call.1} parent=1 // pred_region
      %s40 = ssub.s32 2048, 2048
      %41 = vsyncadd [#allocation7], %s40
      %s42 = sshll.u32 [#allocation8], 4
      %s43 = int_to_ptr.vmem [resolvable:$true] %s42
      %48 = dma.hbm_to_vmem [thread:$0]  %s3, 2048, %s43, [#allocation7], 128, 128, 8
    $region17: #{tpu_custom_call.1} parent=1 // pred_fallthru
      _
    // Predicated region
    $region18: #{tpu_custom_call.1} parent=1 // pred_check
      _
    $region19: #{tpu_custom_call.1} parent=1 // pred_check_branch
      %50 = sbr.rel (0) target = $region21
    $region20: #{tpu_custom_call.1} parent=1 // pred_region
      _
    $region21: #{tpu_custom_call.1} parent=1 // pred_fallthru
      _
    // Predicated region
    $region22: #{tpu_custom_call.1} parent=1 // pred_check
      _
    $region23: #{tpu_custom_call.1} parent=1 // pred_check_branch
      %52 = sbr.rel (0) target = $region25
    $region24: #{tpu_custom_call.1} parent=1 // pred_region
      %53 = dma.done [#allocation4], 128
    $region25: #{tpu_custom_call.1} parent=1 // pred_fallthru
      _
    // Predicated region
    $region26: #{tpu_custom_call.1} parent=1 // pred_check
      _
    $region27: #{tpu_custom_call.1} parent=1 // pred_check_branch
      %55 = sbr.rel (0) target = $region29
    $region28: #{tpu_custom_call.1} parent=1 // pred_region
      %56 = dma.done [#allocation7], 2048
    $region29: #{tpu_custom_call.1} parent=1 // pred_fallthru
      _
    // Predicated region
    $region30: #{tpu_custom_call.1} parent=1 // pred_check
      _
    $region31: #{tpu_custom_call.1} parent=1 // pred_check_branch
      %58 = sbr.rel (0) target = $region33
    $region32: #{tpu_custom_call.1} parent=1 // pred_region
      %59 = dma.done [#allocation7], 2048
    $region33: #{tpu_custom_call.1} parent=1 // pred_fallthru
      _
    %p60 = scmp.eq.s32.totalorder 0, 0
    // Predicated region
    $region34: #{tpu_custom_call.1} parent=1 // pred_check
      %p61 = pneg %p60
    $region35: #{tpu_custom_call.1} parent=1 // pred_check_branch
      %63 = sbr.rel (%p61) target = $region37
    $region36: #{tpu_custom_call.1} parent=1 // pred_region
      %v64 = vld [vmem:[%s2] sm:$0x1]
      %v66 = vlaneseq
      %v67 = vshrl.u32 %v66, 7
      %v68 = vsub.s32 0, %v67
      %v69 = vrot.slane %v64, %v68
      %v71 = vadd.f32 %v69, 0.0
      %72 = vst [vmem:[#allocation2] sm:$0xff] %v71
    $region37: #{tpu_custom_call.1} parent=1 // pred_fallthru
      _
    %v73 = vld [vmem:[#allocation3] sm:$0xff]
    %v74 = vld [vmem:[#allocation2] sm:$0xff]
    %v75 = vld [vmem:[#allocation6] sm:$0xff]
    %v76 = vld [vmem:[#allocation6 + $0x8] sm:$0xff]
    %v77 = vld [vmem:[#allocation6 + $0x10] sm:$0xff]
    %v78 = vld [vmem:[#allocation6 + $0x18] sm:$0xff]
    %v79 = vld [vmem:[#allocation6 + $0x20] sm:$0xff]
    %v80 = vld [vmem:[#allocation6 + $0x28] sm:$0xff]
    %v81 = vld [vmem:[#allocation6 + $0x30] sm:$0xff]
    %v82 = vld [vmem:[#allocation6 + $0x38] sm:$0xff]
    %v83 = vld [vmem:[#allocation6 + $0x40] sm:$0xff]
    %v84 = vld [vmem:[#allocation6 + $0x48] sm:$0xff]
    %v85 = vld [vmem:[#allocation6 + $0x50] sm:$0xff]
    %v86 = vld [vmem:[#allocation6 + $0x58] sm:$0xff]
    %v87 = vld [vmem:[#allocation6 + $0x60] sm:$0xff]
    %v88 = vld [vmem:[#allocation6 + $0x68] sm:$0xff]
    %v89 = vld [vmem:[#allocation6 + $0x70] sm:$0xff]
    %v90 = vld [vmem:[#allocation6 + $0x78] sm:$0xff]
    %91 = vmatprep.subr.mxu0 0.0
    %92 = vmatpush1.msra.mxu0 %v90
    %93 = vmatprep.subr.mxu0 0.0
    %94 = vmatpush1.msra.mxu0 %v89
    %95 = vmatprep.subr.mxu0 0.0
    %96 = vmatpush1.msra.mxu0 %v88
    %97 = vmatprep.subr.mxu0 0.0
    %98 = vmatpush1.msra.mxu0 %v87
    %99 = vmatprep.subr.mxu0 0.0
    %100 = vmatpush1.msra.mxu0 %v86
    %101 = vmatprep.subr.mxu0 0.0
    %102 = vmatpush1.msra.mxu0 %v85
    %103 = vmatprep.subr.mxu0 0.0
    %104 = vmatpush1.msra.mxu0 %v84
    %105 = vmatprep.subr.mxu0 0.0
    %106 = vmatpush1.msra.mxu0 %v83
    %107 = vmatprep.subr.mxu0 0.0
    %108 = vmatpush1.msra.mxu0 %v82
    %109 = vmatprep.subr.mxu0 0.0
    %110 = vmatpush1.msra.mxu0 %v81
    %111 = vmatprep.subr.mxu0 0.0
    %112 = vmatpush1.msra.mxu0 %v80
    %113 = vmatprep.subr.mxu0 0.0
    %114 = vmatpush1.msra.mxu0 %v79
    %115 = vmatprep.subr.mxu0 0.0
    %116 = vmatpush1.msra.mxu0 %v78
    %117 = vmatprep.subr.mxu0 0.0
    %118 = vmatpush1.msra.mxu0 %v77
    %119 = vmatprep.subr.mxu0 0.0
    %120 = vmatpush1.msra.mxu0 %v76
    %121 = vmatprep.subr.mxu0 0.0
    %122 = vmatpush1.msra.mxu0 %v75
    %123 = vmatprep.subr.mxu0 0.0
    %124 = vmatpush2.msra.mxu0 0.0
    %125 = vmatprep.subr.mxu0 0.0
    %126 = vmatpush2.msra.mxu0 0.0
    %127 = vmatprep.subr.mxu0 0.0
    %128 = vmatpush2.msra.mxu0 0.0
    %129 = vmatprep.subr.mxu0 0.0
    %130 = vmatpush2.msra.mxu0 0.0
    %131 = vmatprep.subr.mxu0 0.0
    %132 = vmatpush2.msra.mxu0 0.0
    %133 = vmatprep.subr.mxu0 0.0
    %134 = vmatpush2.msra.mxu0 0.0
    %135 = vmatprep.subr.mxu0 0.0
    %136 = vmatpush2.msra.mxu0 0.0
    %137 = vmatprep.subr.mxu0 0.0
    %138 = vmatpush2.msra.mxu0 0.0
    %139 = vmatprep.subr.mxu0 0.0
    %140 = vmatpush2.msra.mxu0 0.0
    %141 = vmatprep.subr.mxu0 0.0
    %142 = vmatpush2.msra.mxu0 0.0
    %143 = vmatprep.subr.mxu0 0.0
    %144 = vmatpush2.msra.mxu0 0.0
    %145 = vmatprep.subr.mxu0 0.0
    %146 = vmatpush2.msra.mxu0 0.0
    %147 = vmatprep.subr.mxu0 0.0
    %148 = vmatpush2.msra.mxu0 0.0
    %149 = vmatprep.subr.mxu0 0.0
    %150 = vmatpush2.msra.mxu0 0.0
    %151 = vmatprep.subr.mxu0 0.0
    %152 = vmatpush2.msra.mxu0 0.0
    %153 = vmatprep.subr.mxu0 0.0
    %154 = vmatpush2.msra.mxu0 0.0
    %155 = vmatprep.mubr.f32.mxu0 0.0
    %156 = vmatmul.mubr.f32.gmra.mxu0 %v73
    %v157 = vpop.f32.mrf.mxu0
    %v158 = vadd.f32 0.0, %v157
    %v159 = vpop.f32.mrf.mxu0
    %160 = vdwg.mxu0
    %v161 = vadd.f32 %v74, %v158
    %162 = vst [vmem:[#allocation2] sm:$0xff] %v161
    // Predicated region
    $region38: #{tpu_custom_call.1} parent=1 // pred_check
      %p163 = pneg %p60
    $region39: #{tpu_custom_call.1} parent=1 // pred_check_branch
      %165 = sbr.rel (%p163) target = $region41
    $region40: #{tpu_custom_call.1} parent=1 // pred_region
      %v166 = vld [vmem:[#allocation2] sm:$0xff]
      %v167 = vtanh.pop %v166
      %v168 = vld [vmem:[#allocation8] sm:$0xff]
      %v169 = vld [vmem:[#allocation8 + $0x8] sm:$0xff]
      %v170 = vld [vmem:[#allocation8 + $0x10] sm:$0xff]
      %v171 = vld [vmem:[#allocation8 + $0x18] sm:$0xff]
      %v172 = vld [vmem:[#allocation8 + $0x20] sm:$0xff]
      %v173 = vld [vmem:[#allocation8 + $0x28] sm:$0xff]
      %v174 = vld [vmem:[#allocation8 + $0x30] sm:$0xff]
      %v175 = vld [vmem:[#allocation8 + $0x38] sm:$0xff]
      %v176 = vld [vmem:[#allocation8 + $0x40] sm:$0xff]
      %v177 = vld [vmem:[#allocation8 + $0x48] sm:$0xff]
      %v178 = vld [vmem:[#allocation8 + $0x50] sm:$0xff]
      %v179 = vld [vmem:[#allocation8 + $0x58] sm:$0xff]
      %v180 = vld [vmem:[#allocation8 + $0x60] sm:$0xff]
      %v181 = vld [vmem:[#allocation8 + $0x68] sm:$0xff]
      %v182 = vld [vmem:[#allocation8 + $0x70] sm:$0xff]
      %v183 = vld [vmem:[#allocation8 + $0x78] sm:$0xff]
      %v184 = vld [vmem:[%s4] sm:$0x1]
      %v186 = vlaneseq
      %v187 = vshrl.u32 %v186, 7
      %v188 = vsub.s32 0, %v187
      %v189 = vrot.slane %v184, %v188
      %191 = vmatprep.subr.mxu0 0.0
      %192 = vmatpush1.msra.mxu0 %v183
      %193 = vmatprep.subr.mxu0 0.0
      %194 = vmatpush1.msra.mxu0 %v182
      %195 = vmatprep.subr.mxu0 0.0
      %196 = vmatpush1.msra.mxu0 %v181
      %197 = vmatprep.subr.mxu0 0.0
      %198 = vmatpush1.msra.mxu0 %v180
      %199 = vmatprep.subr.mxu0 0.0
      %200 = vmatpush1.msra.mxu0 %v179
      %201 = vmatprep.subr.mxu0 0.0
      %202 = vmatpush1.msra.mxu0 %v178
      %203 = vmatprep.subr.mxu0 0.0
      %204 = vmatpush1.msra.mxu0 %v177
      %205 = vmatprep.subr.mxu0 0.0
      %206 = vmatpush1.msra.mxu0 %v176
      %207 = vmatprep.subr.mxu0 0.0
      %208 = vmatpush1.msra.mxu0 %v175
      %209 = vmatprep.subr.mxu0 0.0
      %210 = vmatpush1.msra.mxu0 %v174
      %211 = vmatprep.subr.mxu0 0.0
      %212 = vmatpush1.msra.mxu0 %v173
      %213 = vmatprep.subr.mxu0 0.0
      %214 = vmatpush1.msra.mxu0 %v172
      %215 = vmatprep.subr.mxu0 0.0
      %216 = vmatpush1.msra.mxu0 %v171
      %217 = vmatprep.subr.mxu0 0.0
      %218 = vmatpush1.msra.mxu0 %v170
      %219 = vmatprep.subr.mxu0 0.0
      %220 = vmatpush1.msra.mxu0 %v169
      %221 = vmatprep.subr.mxu0 0.0
      %222 = vmatpush1.msra.mxu0 %v168
      %223 = vmatprep.subr.mxu0 0.0
      %224 = vmatpush2.msra.mxu0 0.0
      %225 = vmatprep.subr.mxu0 0.0
      %226 = vmatpush2.msra.mxu0 0.0
      %227 = vmatprep.subr.mxu0 0.0
      %228 = vmatpush2.msra.mxu0 0.0
      %229 = vmatprep.subr.mxu0 0.0
      %230 = vmatpush2.msra.mxu0 0.0
      %231 = vmatprep.subr.mxu0 0.0
      %232 = vmatpush2.msra.mxu0 0.0
      %233 = vmatprep.subr.mxu0 0.0
      %234 = vmatpush2.msra.mxu0 0.0
      %235 = vmatprep.subr.mxu0 0.0
      %236 = vmatpush2.msra.mxu0 0.0
      %237 = vmatprep.subr.mxu0 0.0
      %238 = vmatpush2.msra.mxu0 0.0
      %239 = vmatprep.subr.mxu0 0.0
      %240 = vmatpush2.msra.mxu0 0.0
      %241 = vmatprep.subr.mxu0 0.0
      %242 = vmatpush2.msra.mxu0 0.0
      %243 = vmatprep.subr.mxu0 0.0
      %244 = vmatpush2.msra.mxu0 0.0
      %245 = vmatprep.subr.mxu0 0.0
      %246 = vmatpush2.msra.mxu0 0.0
      %247 = vmatprep.subr.mxu0 0.0
      %248 = vmatpush2.msra.mxu0 0.0
      %249 = vmatprep.subr.mxu0 0.0
      %250 = vmatpush2.msra.mxu0 0.0
      %251 = vmatprep.subr.mxu0 0.0
      %252 = vmatpush2.msra.mxu0 0.0
      %253 = vmatprep.subr.mxu0 0.0
      %254 = vmatpush2.msra.mxu0 0.0
      %255 = vmatprep.mubr.f32.mxu0 0.0
      %256 = vmatmul.mubr.f32.gmra.mxu0 %v167
      %v257 = vpop.f32.mrf.mxu0
      %v258 = vadd.f32 %v189, %v257
      %v259 = vpop.f32.mrf.mxu0
      %260 = vdwg.mxu0
      %261 = vst [vmem:[#allocation9] sm:$0xff] %v258
    $region41: #{tpu_custom_call.1} parent=1 // pred_fallthru
      _
    // Predicated region
    $region42: #{tpu_custom_call.1} parent=1 // pred_check
      _
    $region43: #{tpu_custom_call.1} parent=1 // pred_check_branch
      %263 = sbr.rel (0) target = $region45
    $region44: #{tpu_custom_call.1} parent=1 // pred_region
      %s265 = ssub.s32 128, 128
      %266 = vsyncadd [#allocation5], %s265
      %s268 = sshll.u32 [#allocation9], 4
      %s269 = int_to_ptr.vmem [resolvable:$true] %s268
      %271 = dma.vmem_to_hbm [thread:$0]  %s269, 128, %s5, [#allocation5]
    $region45: #{tpu_custom_call.1} parent=1 // pred_fallthru
      _
    // Predicated region
    $region46: #{tpu_custom_call.1} parent=1 // pred_check
      _
    $region47: #{tpu_custom_call.1} parent=1 // pred_check_branch
      %273 = sbr.rel (0) target = $region49
    $region48: #{tpu_custom_call.1} parent=1 // pred_region
      %274 = dma.done [#allocation5], 128
    $region49: #{tpu_custom_call.1} parent=1 // pred_fallthru
      _
    %275 = vsyncpa [#allocation4], 1
    %276 = vsyncpa [#allocation7], 1
    %277 = vsyncpa [#allocation5], 1

</llo_original>
